<compile_context>
chip_gen: v7x
topology: tpu7x:2x2x1
jax: 0.10.0
libtpu: 0.0.40
codegen_flags: <defaults>
</compile_context>

<pallas_src>
import jax
import jax.numpy as jnp
from jax.experimental import pallas as pl
from jax.experimental.pallas import tpu as pltpu


def _attn_kernel(src_ref, mem_ref, utr_ref, ids_ref, bias_ref,
                 w_in_t_ref, w_out_c_ref, w_out_src_ref,
                 c_ref, attn_h_ref, align_ref):
    bb, tt, d = src_ref.shape
    sn = utr_ref.shape[2]
    s = mem_ref.shape[1]
    mxu_dtype = mem_ref.dtype

    src = src_ref[...]                                    # (BB, TT, D)
    mem = mem_ref[...]                                    # (BB, S, D)

    # --- score(): attn_type == 'general' --------------------------------
    # linear_in over all BB*TT rows; the wrapper guarantees this reshape is
    # layout-trivial (BB == 1 or TT a multiple of the sublane tile).
    src2 = src.reshape(bb * tt, d)
    h_t = jnp.dot(src2, w_in_t_ref[...],
                  preferred_element_type=jnp.float32)     # (BB*TT, D) f32
    h_t3 = h_t.astype(mxu_dtype).reshape(bb, tt, d)

    # Batched last-dim contraction: memory_bank.T is never materialized.
    scores = jnp.einsum('btd,bsd->bts', h_t3, mem,
                        preferred_element_type=jnp.float32)  # (BB, TT, S)

    # --- sequence mask: additive 0 / -inf bias, broadcast over TT --------
    scores = scores + bias_ref[...]                       # (BB, 1, S)

    # --- seqHRE rescale folded into log-space -> single softmax ----------
    # softmax(s) * u / sum(.) == softmax(s + log u).  log touches only the
    # tiny (BB, TT, SN) tensor (EUP slot); the gather is a select chain
    # seeded with n = 0 (SN-1 selects + 1 add instead of the old one-hot /
    # expand_utr full-tile passes + second normalization).
    log_utr = jnp.log(utr_ref[...])                       # (BB, TT, SN) f32
    ids = ids_ref[...]                                    # (BB, 1, S) int32
    gathered = jnp.broadcast_to(log_utr[:, :, 0:1], (bb, tt, s))
    for n in range(1, sn):
        gathered = jnp.where(ids == n, log_utr[:, :, n:n + 1], gathered)
    scores = scores + gathered

    # --- numerically-stable softmax over src_len -------------------------
    m = jnp.max(scores, axis=-1, keepdims=True)
    e = jnp.exp(scores - m)
    align = e * pl.reciprocal(jnp.sum(e, axis=-1, keepdims=True),
                              approx=True)                # (BB, TT, S) f32

    # --- context vector c = align @ memory_bank --------------------------
    c = jnp.einsum('bts,bsd->btd', align.astype(mxu_dtype), mem,
                   preferred_element_type=jnp.float32)    # (BB, TT, D) f32

    # --- output_attn_h: tanh(linear_out([c, source])) without the concat -
    c2 = c.astype(mxu_dtype).reshape(bb * tt, d)
    attn_h = jnp.tanh(
        jnp.dot(c2, w_out_c_ref[...], preferred_element_type=jnp.float32)
        + jnp.dot(src2, w_out_src_ref[...],
                  preferred_element_type=jnp.float32))    # (BB*TT, D)

    c_ref[...] = c
    attn_h_ref[...] = attn_h.reshape(bb, tt, d)
    align_ref[...] = align


def _vmem_block_bytes(bb, tt, s, d, sn, compute_itemsize):
    """Rough per-step VMEM estimate: double-buffered blocks + live temps."""
    b32 = 4
    mem_blk = 2 * bb * s * d * compute_itemsize           # memory_bank (2x buf)
    src_blk = 2 * bb * tt * d * compute_itemsize          # source      (2x buf)
    small_in = (2 * (bb * tt * sn * b32 + 2 * bb * s * b32)
                + 2 * 3 * d * d * compute_itemsize)       # utr/ids/bias/weights
    out_blk = 2 * (2 * bb * tt * d + bb * tt * s) * b32   # c, attn_h, align
    temps = 4 * bb * tt * s * b32 + 3 * bb * tt * d * b32  # scores/e/align/c/h_t
    return mem_blk + src_blk + small_in + out_blk + temps


def _choose_block_t(t, s, d, sn, compute_itemsize, vmem_budget_bytes):
    """Largest T tile (sublane multiple or full T) that fits the budget."""
    cands = sorted({t} | {tt for tt in range(8, t + 1, 8) if t % tt == 0},
                   reverse=True)
    for tt in cands:
        if _vmem_block_bytes(1, tt, s, d, sn, compute_itemsize) \
                <= vmem_budget_bytes:
            return tt
    return cands[-1]


def seq_hre_word_global_attention(source, memory_bank, memory_lengths,
                                  utr_align_vectors, word_utr_ids,
                                  w_in, w_out, *, block_b=1, block_t=None,
                                  time_major=True,
                                  compute_dtype=jnp.bfloat16,
                                  vmem_budget_bytes=24 << 20):
    """Returns (c, attn_h, align_vectors).

    time_major=True matches the PyTorch multi-step convention (T, B, .);
    time_major=False skips the wrapper transposes (batch-major hot path).
    """
    B, T, D = source.shape
    _, S, _ = memory_bank.shape
    SN = utr_align_vectors.shape[-1]
    itemsize = jnp.dtype(compute_dtype).itemsize

    BB = block_b
    assert B % BB == 0, "block_b must divide batch"
    TT = (_choose_block_t(T, S, D, SN, itemsize, vmem_budget_bytes)
          if block_t is None else block_t)
    assert T % TT == 0, "block_t must divide tgt_len"
    assert TT == T or TT % 8 == 0, "T tile must be a sublane multiple or T"
    sub = 16 if itemsize == 2 else 8
    assert BB == 1 or TT % sub == 0, (
        "block_b > 1 needs block_t to be a multiple of the sublane tile "
        "so the (BB,TT,D)->(BB*TT,D) merge is layout-trivial")

    grid = (B // BB, T // TT)

    src_c = source.astype(compute_dtype)
    mem_c = memory_bank.astype(compute_dtype)
    utr_f = utr_align_vectors.astype(jnp.float32)
    ids3 = word_utr_ids.reshape(B, 1, S).astype(jnp.int32)
    valid = jnp.arange(S, dtype=jnp.int32)[None, :] < memory_lengths[:, None]
    mask_bias = jnp.where(valid, 0.0, -jnp.inf).astype(jnp.float32)
    mask_bias = mask_bias.reshape(B, 1, S)

    # nn.Linear computes x @ W^T: pass transposed weights.  linear_out's
    # (D, 2D) weight is split so [c, source] is never concatenated.
    w_in_t = w_in.T.astype(compute_dtype)                  # (D, D)
    w_out_c_t = w_out[:, :D].T.astype(compute_dtype)       # (D, D) -> c
    w_out_src_t = w_out[:, D:].T.astype(compute_dtype)     # (D, D) -> source

    vmem_est = _vmem_block_bytes(BB, TT, S, D, SN, itemsize)
    vmem_limit = int(min(64 << 20, max(32 << 20, 2 * vmem_est)))

    grid_spec = pltpu.PrefetchScalarGridSpec(
        num_scalar_prefetch=0,
        grid=grid,
        in_specs=[
            pl.BlockSpec((BB, TT, D), lambda b, t: (b, t, 0)),   # source
            # index_map ignores t -> memory_bank block stays resident
            # across the inner T steps (loaded once per batch block).
            pl.BlockSpec((BB, S, D), lambda b, t: (b, 0, 0)),    # memory_bank
            pl.BlockSpec((BB, TT, SN), lambda b, t: (b, t, 0)),  # utr_align
            pl.BlockSpec((BB, 1, S), lambda b, t: (b, 0, 0)),    # word_utr_ids
            pl.BlockSpec((BB, 1, S), lambda b, t: (b, 0, 0)),    # mask bias
            pl.BlockSpec((D, D), lambda b, t: (0, 0)),           # W_in^T
            pl.BlockSpec((D, D), lambda b, t: (0, 0)),           # W_out_c^T
            pl.BlockSpec((D, D), lambda b, t: (0, 0)),           # W_out_src^T
        ],
        out_specs=[
            pl.BlockSpec((BB, TT, D), lambda b, t: (b, t, 0)),   # c
            pl.BlockSpec((BB, TT, D), lambda b, t: (b, t, 0)),   # attn_h
            pl.BlockSpec((BB, TT, S), lambda b, t: (b, t, 0)),   # align
        ],
    )

    c, attn_h, align = pl.pallas_call(
        _attn_kernel,
        out_shape=(
            jax.ShapeDtypeStruct((B, T, D), jnp.float32),
            jax.ShapeDtypeStruct((B, T, D), jnp.float32),
            jax.ShapeDtypeStruct((B, T, S), jnp.float32),
        ),
        grid_spec=grid_spec,
        compiler_params=pltpu.CompilerParams(
            dimension_semantics=("parallel", "parallel"),
            vmem_limit_bytes=vmem_limit),
    )(src_c, mem_c, utr_f, ids3, mask_bias, w_in_t, w_out_c_t, w_out_src_t)

    if not time_major:
        return c, attn_h, align
    # TODO(synk): these transposes re-stream B*T*(2D+S)*4 bytes through HBM;
    # prefer time_major=False when the consumer accepts batch-major layout.
    return (jnp.transpose(c, (1, 0, 2)),
            jnp.transpose(attn_h, (1, 0, 2)),
            jnp.transpose(align, (1, 0, 2)))


def _reference(source, memory_bank, memory_lengths, utr_align_vectors,
               word_utr_ids, w_in, w_out, compute_dtype=None):
    """Pure-JAX replica of the PyTorch forward.

    compute_dtype=None -> full f32 reference; otherwise applies the same
    MXU-operand casts as the kernel (mixed-precision reference).
    """
    B, T, D = source.shape
    _, S, _ = memory_bank.shape
    cast = (lambda x: x) if compute_dtype is None else (
        lambda x: x.astype(compute_dtype))
    src_c, mem_c = cast(source), cast(memory_bank)
    h_t = jnp.einsum('btd,ed->bte', src_c, cast(w_in),
                     preferred_element_type=jnp.float32)          # linear_in
    scores = jnp.einsum('btd,bsd->bts', cast(h_t), mem_c,
                        preferred_element_type=jnp.float32)
    mask = jnp.arange(S)[None, None, :] < memory_lengths[:, None, None]
    scores = jnp.where(mask, scores, -jnp.inf)
    align = jax.nn.softmax(scores, axis=-1)
    gathered = jnp.take_along_axis(
        utr_align_vectors.astype(jnp.float32),
        jnp.broadcast_to(word_utr_ids[:, None, :], (B, T, S)), axis=-1)
    align = align * gathered
    align = align / jnp.sum(align, axis=-1, keepdims=True)
    c = jnp.einsum('bts,bsd->btd', cast(align), mem_c,
                   preferred_element_type=jnp.float32)
    concat = jnp.concatenate([cast(c), src_c], axis=-1)
    attn_h = jnp.tanh(jnp.einsum('btk,dk->btd', concat, cast(w_out),
                                 preferred_element_type=jnp.float32))
    return (jnp.transpose(c, (1, 0, 2)),
            jnp.transpose(attn_h, (1, 0, 2)),
            jnp.transpose(align, (1, 0, 2)))


if __name__ == "__main__":
    B, T, S, D, SN = 2, 16, 16, 32, 4

    key = jax.random.PRNGKey(0)
    k1, k2, k3, k4, k5 = jax.random.split(key, 5)

    source = jax.random.normal(k1, (B, T, D), dtype=jnp.float32)
    memory_bank = jax.random.normal(k2, (B, S, D), dtype=jnp.float32)
    memory_lengths = jnp.array([S, S - 4], dtype=jnp.int32)
    utr_align_vectors = jax.nn.softmax(
        jax.random.normal(k3, (B, T, SN), dtype=jnp.float32), axis=-1)
    word_utr_ids = jnp.broadcast_to(
        (jnp.arange(S, dtype=jnp.int32) // (S // SN))[None, :], (B, S))

    # Parameter shapes from __init__: linear_in (D, D) bias-free,
    # linear_out (D, 2D) bias-free for attn_type='general'.
    w_in = jax.random.normal(k4, (D, D), dtype=jnp.float32) * 0.1
    w_out = jax.random.normal(k5, (D, 2 * D), dtype=jnp.float32) * 0.1

    ref_f32 = _reference(source, memory_bank, memory_lengths,
                         utr_align_vectors, word_utr_ids, w_in, w_out)
    ref_mix = _reference(source, memory_bank, memory_lengths,
                         utr_align_vectors, word_utr_ids, w_in, w_out,
                         compute_dtype=jnp.bfloat16)

    # Run the default (budget-chosen) block and an explicit T-tiled grid.
    for bt in (None, 8):
        outs = seq_hre_word_global_attention(
            source, memory_bank, memory_lengths, utr_align_vectors,
            word_utr_ids, w_in, w_out, block_t=bt)
        jax.block_until_ready(outs)
        for o, rm, rf in zip(outs, ref_mix, ref_f32):
            # Tight check vs. the same-cast mixed-precision reference
            # (remaining delta: approx reciprocal + accumulation order).
            assert jnp.allclose(o, rm, atol=1e-2, rtol=1e-2)
            # Loose check vs. the full-f32 reference (bf16 MXU feeds).
            assert jnp.allclose(o, rf, atol=5e-2, rtol=5e-2)

    print("KERNEL_OK")
</pallas_src>

<mosaic_0001>
module attributes {stable_mosaic.version = 11 : i64} {
  func.func @_attn_kernel(%arg0: i32, %arg1: i32, %arg2: memref<1x16x32xbf16, #tpu.memory_space<vmem>>, %arg3: memref<1x16x32xbf16, #tpu.memory_space<vmem>>, %arg4: memref<1x16x4xf32, #tpu.memory_space<vmem>>, %arg5: memref<1x1x16xi32, #tpu.memory_space<vmem>>, %arg6: memref<1x1x16xf32, #tpu.memory_space<vmem>>, %arg7: memref<32x32xbf16, #tpu.memory_space<vmem>>, %arg8: memref<32x32xbf16, #tpu.memory_space<vmem>>, %arg9: memref<32x32xbf16, #tpu.memory_space<vmem>>, %arg10: memref<1x16x32xf32, #tpu.memory_space<vmem>>, %arg11: memref<1x16x32xf32, #tpu.memory_space<vmem>>, %arg12: memref<1x16x16xf32, #tpu.memory_space<vmem>>) attributes {dimension_semantics = [#tpu.dimension_semantics<parallel>, #tpu.dimension_semantics<parallel>], iteration_bounds = array<i64: 2, 1>, scalar_prefetch = 0 : i64, scratch_operands = 0 : i64, tpu.core_type = #tpu.core_type<tc>, window_params = [{transform_indices = @transform_0, window_bounds = array<i64: 1, 16, 32>}, {transform_indices = @transform_1, window_bounds = array<i64: 1, 16, 32>}, {transform_indices = @transform_2, window_bounds = array<i64: 1, 16, 4>}, {transform_indices = @transform_3, window_bounds = array<i64: 1, 1, 16>}, {transform_indices = @transform_4, window_bounds = array<i64: 1, 1, 16>}, {pipeline_mode = #tpu.pipeline_mode<synchronous>, transform_indices = @transform_5, window_bounds = array<i64: 32, 32>}, {pipeline_mode = #tpu.pipeline_mode<synchronous>, transform_indices = @transform_6, window_bounds = array<i64: 32, 32>}, {pipeline_mode = #tpu.pipeline_mode<synchronous>, transform_indices = @transform_7, window_bounds = array<i64: 32, 32>}, {transform_indices = @transform_8, window_bounds = array<i64: 1, 16, 32>}, {transform_indices = @transform_9, window_bounds = array<i64: 1, 16, 32>}, {transform_indices = @transform_10, window_bounds = array<i64: 1, 16, 16>}]} {
    %c0 = arith.constant 0 : index
    %c0_0 = arith.constant 0 : index
    %c0_1 = arith.constant 0 : index
    %0 = vector.load %arg2[%c0, %c0_0, %c0_1] : memref<1x16x32xbf16, #tpu.memory_space<vmem>>, vector<1x16x32xbf16>
    %c0_2 = arith.constant 0 : index
    %c0_3 = arith.constant 0 : index
    %c0_4 = arith.constant 0 : index
    %1 = vector.load %arg3[%c0_2, %c0_3, %c0_4] : memref<1x16x32xbf16, #tpu.memory_space<vmem>>, vector<1x16x32xbf16>
    %2 = vector.shape_cast %0 : vector<1x16x32xbf16> to vector<16x32xbf16>
    %c0_5 = arith.constant 0 : index
    %c0_6 = arith.constant 0 : index
    %3 = vector.load %arg7[%c0_5, %c0_6] : memref<32x32xbf16, #tpu.memory_space<vmem>>, vector<32x32xbf16>
    %cst = arith.constant dense<0.000000e+00> : vector<16x32xf32>
    %4 = tpu.matmul %2, %3, %cst {dimension_numbers = #tpu.dot_dimension_numbers<[1], [0], [0], [1], [0, 0, 1, 1], [], []>} : vector<16x32xbf16>, vector<32x32xbf16>, vector<16x32xf32> -> vector<16x32xf32>
    %5 = arith.truncf %4 : vector<16x32xf32> to vector<16x32xbf16>
    %6 = vector.shape_cast %5 : vector<16x32xbf16> to vector<1x16x32xbf16>
    "tpu.trace_start"() <{level = 10 : i32, message = "btd,bsd->bts"}> : () -> ()
    %cst_7 = arith.constant dense<0.000000e+00> : vector<1x16x16xf32>
    %7 = tpu.matmul %6, %1, %cst_7 {dimension_numbers = #tpu.dot_dimension_numbers<[2], [2], [1], [1], [0, 0, 0, 1, 1, 1], [0], [0]>} : vector<1x16x32xbf16>, vector<1x16x32xbf16>, vector<1x16x16xf32> -> vector<1x16x16xf32>
    "tpu.trace_stop"() : () -> ()
    %c0_8 = arith.constant 0 : index
    %c0_9 = arith.constant 0 : index
    %c0_10 = arith.constant 0 : index
    %8 = vector.load %arg6[%c0_8, %c0_9, %c0_10] : memref<1x1x16xf32, #tpu.memory_space<vmem>>, vector<1x1x16xf32>
    %9 = vector.broadcast %8 : vector<1x1x16xf32> to vector<1x16x16xf32>
    %10 = arith.addf %7, %9 : vector<1x16x16xf32>
    %c0_11 = arith.constant 0 : index
    %c0_12 = arith.constant 0 : index
    %c0_13 = arith.constant 0 : index
    %11 = vector.load %arg4[%c0_11, %c0_12, %c0_13] : memref<1x16x4xf32, #tpu.memory_space<vmem>>, vector<1x16x4xf32>
    %12 = math.log %11 : vector<1x16x4xf32>
    %c0_14 = arith.constant 0 : index
    %c0_15 = arith.constant 0 : index
    %c0_16 = arith.constant 0 : index
    %13 = vector.load %arg5[%c0_14, %c0_15, %c0_16] : memref<1x1x16xi32, #tpu.memory_space<vmem>>, vector<1x1x16xi32>
    %14 = vector.extract_strided_slice %12 {offsets = [0, 0, 0], sizes = [1, 16, 1], strides = [1, 1, 1]} : vector<1x16x4xf32> to vector<1x16x1xf32>
    %15 = vector.shape_cast %14 : vector<1x16x1xf32> to vector<1x16x1xf32>
    %16 = vector.broadcast %15 : vector<1x16x1xf32> to vector<1x16x16xf32>
    %c1_i32 = arith.constant 1 : i32
    %17 = vector.broadcast %c1_i32 : i32 to vector<1x1x16xi32>
    %18 = arith.cmpi eq, %13, %17 : vector<1x1x16xi32>
    %19 = vector.extract_strided_slice %12 {offsets = [0, 0, 1], sizes = [1, 16, 1], strides = [1, 1, 1]} : vector<1x16x4xf32> to vector<1x16x1xf32>
    %20 = vector.shape_cast %18 : vector<1x1x16xi1> to vector<1x1x16xi1>
    %21 = vector.broadcast %20 : vector<1x1x16xi1> to vector<1x16x16xi1>
    %22 = vector.shape_cast %19 : vector<1x16x1xf32> to vector<1x16x1xf32>
    %23 = vector.broadcast %22 : vector<1x16x1xf32> to vector<1x16x16xf32>
    %24 = arith.select %21, %23, %16 : vector<1x16x16xi1>, vector<1x16x16xf32>
    %c2_i32 = arith.constant 2 : i32
    %25 = vector.broadcast %c2_i32 : i32 to vector<1x1x16xi32>
    %26 = arith.cmpi eq, %13, %25 : vector<1x1x16xi32>
    %27 = vector.extract_strided_slice %12 {offsets = [0, 0, 2], sizes = [1, 16, 1], strides = [1, 1, 1]} : vector<1x16x4xf32> to vector<1x16x1xf32>
    %28 = vector.shape_cast %26 : vector<1x1x16xi1> to vector<1x1x16xi1>
    %29 = vector.broadcast %28 : vector<1x1x16xi1> to vector<1x16x16xi1>
    %30 = vector.shape_cast %27 : vector<1x16x1xf32> to vector<1x16x1xf32>
    %31 = vector.broadcast %30 : vector<1x16x1xf32> to vector<1x16x16xf32>
    %32 = arith.select %29, %31, %24 : vector<1x16x16xi1>, vector<1x16x16xf32>
    %c3_i32 = arith.constant 3 : i32
    %33 = vector.broadcast %c3_i32 : i32 to vector<1x1x16xi32>
    %34 = arith.cmpi eq, %13, %33 : vector<1x1x16xi32>
    %35 = vector.extract_strided_slice %12 {offsets = [0, 0, 3], sizes = [1, 16, 1], strides = [1, 1, 1]} : vector<1x16x4xf32> to vector<1x16x1xf32>
    %36 = vector.shape_cast %34 : vector<1x1x16xi1> to vector<1x1x16xi1>
    %37 = vector.broadcast %36 : vector<1x1x16xi1> to vector<1x16x16xi1>
    %38 = vector.shape_cast %35 : vector<1x16x1xf32> to vector<1x16x1xf32>
    %39 = vector.broadcast %38 : vector<1x16x1xf32> to vector<1x16x16xf32>
    %40 = arith.select %37, %39, %32 : vector<1x16x16xi1>, vector<1x16x16xf32>
    %41 = arith.addf %10, %40 : vector<1x16x16xf32>
    %cst_17 = arith.constant dense<0xFF800000> : vector<1x16xf32>
    %42 = vector.multi_reduction <maximumf>, %41, %cst_17 [2] : vector<1x16x16xf32> to vector<1x16xf32>
    %43 = vector.shape_cast %42 : vector<1x16xf32> to vector<1x16x1xf32>
    %44 = vector.broadcast %43 : vector<1x16x1xf32> to vector<1x16x16xf32>
    %45 = arith.subf %41, %44 : vector<1x16x16xf32>
    %46 = math.exp %45 : vector<1x16x16xf32>
    %cst_18 = arith.constant dense<0.000000e+00> : vector<1x16xf32>
    %47 = vector.multi_reduction <add>, %46, %cst_18 [2] : vector<1x16x16xf32> to vector<1x16xf32>
    %48 = vector.shape_cast %47 : vector<1x16xf32> to vector<1x16x1xf32>
    %49 = tpu.reciprocal %48 {approx = true} : vector<1x16x1xf32> -> vector<1x16x1xf32>
    %50 = vector.broadcast %49 : vector<1x16x1xf32> to vector<1x16x16xf32>
    %51 = arith.mulf %46, %50 : vector<1x16x16xf32>
    %52 = arith.truncf %51 : vector<1x16x16xf32> to vector<1x16x16xbf16>
    "tpu.trace_start"() <{level = 10 : i32, message = "bts,bsd->btd"}> : () -> ()
    %cst_19 = arith.constant dense<0.000000e+00> : vector<1x16x32xf32>
    %53 = tpu.matmul %52, %1, %cst_19 {dimension_numbers = #tpu.dot_dimension_numbers<[2], [1], [1], [2], [0, 0, 0, 1, 1, 2], [0], [0]>} : vector<1x16x16xbf16>, vector<1x16x32xbf16>, vector<1x16x32xf32> -> vector<1x16x32xf32>
    "tpu.trace_stop"() : () -> ()
    %54 = arith.truncf %53 : vector<1x16x32xf32> to vector<1x16x32xbf16>
    %55 = vector.shape_cast %54 : vector<1x16x32xbf16> to vector<16x32xbf16>
    %c0_20 = arith.constant 0 : index
    %c0_21 = arith.constant 0 : index
    %56 = vector.load %arg8[%c0_20, %c0_21] : memref<32x32xbf16, #tpu.memory_space<vmem>>, vector<32x32xbf16>
    %cst_22 = arith.constant dense<0.000000e+00> : vector<16x32xf32>
    %57 = tpu.matmul %55, %56, %cst_22 {dimension_numbers = #tpu.dot_dimension_numbers<[1], [0], [0], [1], [0, 0, 1, 1], [], []>} : vector<16x32xbf16>, vector<32x32xbf16>, vector<16x32xf32> -> vector<16x32xf32>
    %c0_23 = arith.constant 0 : index
    %c0_24 = arith.constant 0 : index
    %58 = vector.load %arg9[%c0_23, %c0_24] : memref<32x32xbf16, #tpu.memory_space<vmem>>, vector<32x32xbf16>
    %cst_25 = arith.constant dense<0.000000e+00> : vector<16x32xf32>
    %59 = tpu.matmul %2, %58, %cst_25 {dimension_numbers = #tpu.dot_dimension_numbers<[1], [0], [0], [1], [0, 0, 1, 1], [], []>} : vector<16x32xbf16>, vector<32x32xbf16>, vector<16x32xf32> -> vector<16x32xf32>
    %60 = arith.addf %57, %59 : vector<16x32xf32>
    %61 = math.tanh %60 : vector<16x32xf32>
    %c0_26 = arith.constant 0 : index
    %c0_27 = arith.constant 0 : index
    %c0_28 = arith.constant 0 : index
    %62 = vector.load %arg10[%c0_26, %c0_27, %c0_28] : memref<1x16x32xf32, #tpu.memory_space<vmem>>, vector<1x16x32xf32>
    tpu.vector_store %arg10[%c0_26, %c0_27, %c0_28], %53 {strides = array<i32>} : memref<1x16x32xf32, #tpu.memory_space<vmem>>, vector<1x16x32xf32>,
    %63 = vector.shape_cast %61 : vector<16x32xf32> to vector<1x16x32xf32>
    %c0_29 = arith.constant 0 : index
    %c0_30 = arith.constant 0 : index
    %c0_31 = arith.constant 0 : index
    %64 = vector.load %arg11[%c0_29, %c0_30, %c0_31] : memref<1x16x32xf32, #tpu.memory_space<vmem>>, vector<1x16x32xf32>
    tpu.vector_store %arg11[%c0_29, %c0_30, %c0_31], %63 {strides = array<i32>} : memref<1x16x32xf32, #tpu.memory_space<vmem>>, vector<1x16x32xf32>,
    %c0_32 = arith.constant 0 : index
    %c0_33 = arith.constant 0 : index
    %c0_34 = arith.constant 0 : index
    %65 = vector.load %arg12[%c0_32, %c0_33, %c0_34] : memref<1x16x16xf32, #tpu.memory_space<vmem>>, vector<1x16x16xf32>
    tpu.vector_store %arg12[%c0_32, %c0_33, %c0_34], %51 {strides = array<i32>} : memref<1x16x16xf32, #tpu.memory_space<vmem>>, vector<1x16x16xf32>,
    return
  }
  func.func @transform_0(%arg0: i32, %arg1: i32) -> (i32, i32, i32) {
    %c0_i32 = arith.constant 0 : i32
    %c0_i32_0 = arith.constant 0 : i32
    return %arg0, %arg1, %c0_i32 : i32, i32, i32
  }
  func.func @transform_1(%arg0: i32, %arg1: i32) -> (i32, i32, i32) {
    %c0_i32 = arith.constant 0 : i32
    %c0_i32_0 = arith.constant 0 : i32
    %c0_i32_1 = arith.constant 0 : i32
    return %arg0, %c0_i32, %c0_i32_0 : i32, i32, i32
  }
  func.func @transform_2(%arg0: i32, %arg1: i32) -> (i32, i32, i32) {
    %c0_i32 = arith.constant 0 : i32
    %c0_i32_0 = arith.constant 0 : i32
    return %arg0, %arg1, %c0_i32 : i32, i32, i32
  }
  func.func @transform_3(%arg0: i32, %arg1: i32) -> (i32, i32, i32) {
    %c0_i32 = arith.constant 0 : i32
    %c0_i32_0 = arith.constant 0 : i32
    %c0_i32_1 = arith.constant 0 : i32
    return %arg0, %c0_i32, %c0_i32_0 : i32, i32, i32
  }
  func.func @transform_4(%arg0: i32, %arg1: i32) -> (i32, i32, i32) {
    %c0_i32 = arith.constant 0 : i32
    %c0_i32_0 = arith.constant 0 : i32
    %c0_i32_1 = arith.constant 0 : i32
    return %arg0, %c0_i32, %c0_i32_0 : i32, i32, i32
  }
  func.func @transform_5(%arg0: i32, %arg1: i32) -> (i32, i32) {
    %c0_i32 = arith.constant 0 : i32
    %c0_i32_0 = arith.constant 0 : i32
    %c0_i32_1 = arith.constant 0 : i32
    return %c0_i32, %c0_i32_0 : i32, i32
  }
  func.func @transform_6(%arg0: i32, %arg1: i32) -> (i32, i32) {
    %c0_i32 = arith.constant 0 : i32
    %c0_i32_0 = arith.constant 0 : i32
    %c0_i32_1 = arith.constant 0 : i32
    return %c0_i32, %c0_i32_0 : i32, i32
  }
  func.func @transform_7(%arg0: i32, %arg1: i32) -> (i32, i32) {
    %c0_i32 = arith.constant 0 : i32
    %c0_i32_0 = arith.constant 0 : i32
    %c0_i32_1 = arith.constant 0 : i32
    return %c0_i32, %c0_i32_0 : i32, i32
  }
  func.func @transform_8(%arg0: i32, %arg1: i32) -> (i32, i32, i32) {
    %c0_i32 = arith.constant 0 : i32
    %c0_i32_0 = arith.constant 0 : i32
    return %arg0, %arg1, %c0_i32 : i32, i32, i32
  }
  func.func @transform_9(%arg0: i32, %arg1: i32) -> (i32, i32, i32) {
    %c0_i32 = arith.constant 0 : i32
    %c0_i32_0 = arith.constant 0 : i32
    return %arg0, %arg1, %c0_i32 : i32, i32, i32
  }
  func.func @transform_10(%arg0: i32, %arg1: i32) -> (i32, i32, i32) {
    %c0_i32 = arith.constant 0 : i32
    %c0_i32_0 = arith.constant 0 : i32
    return %arg0, %arg1, %c0_i32 : i32, i32, i32
  }
}

</mosaic_0001>

<llo_original>
// kernel: tpu_custom_call.1
$region0: #{tpu_custom_call.1}
  #allocation0 [shape = 'u32[]', space=smem, size = 0x4, offset = 0x4, fixed_abs, tag = 'smem constant byte address 0x4 - core index']
  #allocation1 [shape = 'u32[144,128]{1,0:T(1,128)}', space=vmem, size = 0x12000, scoped, tag = 'internal scratch']
  %s0 = inlined_call_operand.vmem [shape: bf16[2,16,32], index: 0, kind: input, shape index: {}]
  %s1 = inlined_call_operand.vmem [shape: bf16[2,16,32], index: 1, kind: input, shape index: {}]
  %s2 = inlined_call_operand.vmem [shape: f32[2,16,4], index: 2, kind: input, shape index: {}]
  %s3 = inlined_call_operand.vmem [shape: s32[2,1,16], index: 3, kind: input, shape index: {}]
  %s4 = inlined_call_operand.hbm [shape: f32[2,1,16], index: 4, kind: input, shape index: {}]
  %s5 = inlined_call_operand.vmem [shape: bf16[32,32], index: 5, kind: input, shape index: {}]
  %s6 = inlined_call_operand.hbm [shape: bf16[32,32], index: 6, kind: input, shape index: {}]
  %s7 = inlined_call_operand.vmem [shape: bf16[32,32], index: 7, kind: input, shape index: {}]
  %s8 = inlined_call_operand.hbm [shape: f32[2,16,32], index: 8, kind: output, shape index: {0}]
  %s9 = inlined_call_operand.hbm [shape: f32[2,16,32], index: 9, kind: output, shape index: {1}]
  %s10 = inlined_call_operand.hbm [shape: f32[2,16,16], index: 10, kind: output, shape index: {2}]
  %11 = xla_tuple %s8, %s9, %s10
  %s12 = sld [smem:[#allocation0]]
  $region89: #{tpu_custom_call.1} parent=0
    _
  %s14 = ssub.s32 1, %s12
  %s15 = scalar_select 0, %s14, %s12
  $region1: #{tpu_custom_call.1} parent=0
    #allocation2 [shape = 'u8[1024]{0}', space=vmem, size = 0x400, scoped, tag = 'input window, operand 4']
    #allocation3 [shape = 's32[2]{0}', space=sflag, size = 0x8, scoped, tag = 'scoped memory for tpu_custom_call.1']
    #allocation4 [shape = 's32[2]{0}', space=sflag, size = 0x8, scoped, tag = 'scoped memory for tpu_custom_call.1']
    #allocation5 [shape = 'u8[8192]{0}', space=vmem, size = 0x2000, scoped, tag = 'input window, operand 6, single buffered']
    #allocation6 [shape = 's32[1]{0}', space=sflag, size = 0x4, scoped, tag = 'scoped memory for tpu_custom_call.1']
    #allocation7 [shape = 'u8[16384]{0}', space=vmem, size = 0x4000, scoped, tag = 'output window, operand 0']
    #allocation8 [shape = 'u8[16384]{0}', space=vmem, size = 0x4000, scoped, tag = 'output window, operand 1']
    #allocation9 [shape = 's32[2]{0}', space=sflag, size = 0x8, scoped, tag = 'scoped memory for tpu_custom_call.1']
    #allocation10 [shape = 'u8[16384]{0}', space=vmem, size = 0x4000, scoped, tag = 'output window, operand 2']
    %16 = vsyncpa [#allocation3], 0
    %s17 = scalar_lea.sflag [#allocation3], 1
    %18 = vsyncpa %s17, 0
    %19 = vsyncpa [#allocation6], 0
    %20 = vsyncpa [#allocation4], 0
    %s21 = scalar_lea.sflag [#allocation4], 1
    %22 = vsyncpa %s21, 0
    %23 = vsyncpa [#allocation9], 0
    %s24 = scalar_lea.sflag [#allocation9], 1
    %25 = vsyncpa %s24, 0
    loop: start=0, step=1, limit=4
    $region2: #{tpu_custom_call.1} parent=1 // loop_pre_header
      _
    $region3: #{tpu_custom_call.1} parent=1 // loop_header
      %s27 = sphi 0, %s31
      %p28 = scmp.ge.s32.totalorder %s27, 4
      %s34 = sphi 0, %s46
      %s35 = sphi 0, %s42
      %s36 = sphi 0, %s34
      %s37 = sphi 0, %s35
      %s38 = sphi 0, %s36
      %s39 = sphi 0, %s37
      %s51 = sphi 0, %s53
      %s54 = sphi 0, %s51
      %s55 = sphi 0, %s54
      %s71 = sphi 0, %s55
      %s77 = sphi 0, %s79
      %s80 = sphi 0, %s77
      %s81 = sphi 0, %s80
      %s97 = sphi 0, %s81
      %s105 = sphi 0, %s107
      %s108 = sphi 0, %s105
      %s109 = sphi 0, %s108
      %s125 = sphi 0, %s109
      %s131 = sphi 0, %s133
      %s134 = sphi 0, %s131
      %s135 = sphi 0, %s134
      %s151 = sphi 0, %s135
      %s157 = sphi 0, %s159
      %s160 = sphi 0, %s157
      %s161 = sphi 0, %s160
      %s177 = sphi 0, %s161
      %s181 = sphi 0, %s181
      %s183 = sphi 0, %s181
      %s184 = sphi 0, %s183
      %s198 = sphi 0, %s184
      %s202 = sphi 0, %s202
      %s204 = sphi 0, %s202
      %s205 = sphi 0, %s204
      %s219 = sphi 0, %s205
      %s223 = sphi 0, %s223
      %s225 = sphi 0, %s223
      %s226 = sphi 0, %s225
      %s240 = sphi 0, %s226
      %s248 = sphi 0, %s250
      %s251 = sphi 0, %s248
      %s252 = sphi 0, %s251
      %s268 = sphi 0, %s252
      %s276 = sphi 0, %s278
      %s279 = sphi 0, %s276
      %s280 = sphi 0, %s279
      %s296 = sphi 0, %s280
      %s304 = sphi 0, %s306
      %s307 = sphi 0, %s304
      %s308 = sphi 0, %s307
      %s324 = sphi 0, %s308
    $region4: #{tpu_custom_call.1} parent=1 // loop_header_branch
      %30 = sbr.rel (%p28) target = $region8
    $region5: #{tpu_custom_call.1} parent=1 // loop_body
      %s32 = ssub.s32 %s27, 1
      %s33 = ssub.s32 %s27, 2
      %s40 = sadd.s32 1, %s35
      %p41 = scmp.ge.s32.totalorder %s40, 1
      %s42 = scalar_select %p41, 0, %s40
      %s43 = sadd.s32 1, %s34
      %s44 = scalar_select %p41, %s43, %s34
      %p45 = scmp.ge.s32.totalorder %s44, 2
      %s46 = scalar_select %p45, 0, %s44
      %s47 = ssub.s32 %s34, %s46
      %s48 = ssub.s32 %s35, %s42
      %s49 = sor.u32 %s47, %s48
      %p50 = scmp.eq.s32.totalorder %s49, 0
      %s52 = sadd.s32 %s51, 1
      %s53 = scalar_select %p50, %s51, %s52
      %p56 = pneg %p50
      %p57 = scmp.eq.s32.totalorder %s27, 1
      %p58 = por %p56, %p57
      %p59 = scmp.ne.s32.totalorder %s51, %s54
      %p60 = scmp.eq.s32.totalorder %s27, 0
      %p61 = por %p59, %p60
      %p62 = scmp.ne.s32.totalorder %s51, %s54
      %p63 = scmp.eq.s32.totalorder %s32, 1
      %p64 = por %p62, %p63
      %p65 = scmp.ne.s32.totalorder %s54, %s55
      %p66 = scmp.eq.s32.totalorder %s32, 0
      %p67 = por %p65, %p66
      %p68 = scmp.ne.s32.totalorder %s54, %s55
      %p69 = scmp.eq.s32.totalorder %s33, 1
      %p70 = por %p68, %p69
      %p72 = scmp.ne.s32.totalorder %s55, %s71
      %p73 = scmp.eq.s32.totalorder %s33, 0
      %p74 = por %p72, %p73
      %s75 = ssub.s32 %s34, %s46
      %p76 = scmp.eq.s32.totalorder %s75, 0
      %s78 = sadd.s32 %s77, 1
      %s79 = scalar_select %p76, %s77, %s78
      %p82 = pneg %p76
      %p83 = scmp.eq.s32.totalorder %s27, 1
      %p84 = por %p82, %p83
      %p85 = scmp.ne.s32.totalorder %s77, %s80
      %p86 = scmp.eq.s32.totalorder %s27, 0
      %p87 = por %p85, %p86
      %p88 = scmp.ne.s32.totalorder %s77, %s80
      %p89 = scmp.eq.s32.totalorder %s32, 1
      %p90 = por %p88, %p89
      %p91 = scmp.ne.s32.totalorder %s80, %s81
      %p92 = scmp.eq.s32.totalorder %s32, 0
      %p93 = por %p91, %p92
      %p94 = scmp.ne.s32.totalorder %s80, %s81
      %p95 = scmp.eq.s32.totalorder %s33, 1
      %p96 = por %p94, %p95
      %p98 = scmp.ne.s32.totalorder %s81, %s97
      %p99 = scmp.eq.s32.totalorder %s33, 0
      %p100 = por %p98, %p99
      %s101 = ssub.s32 %s34, %s46
      %s102 = ssub.s32 %s35, %s42
      %s103 = sor.u32 %s101, %s102
      %p104 = scmp.eq.s32.totalorder %s103, 0
      %s106 = sadd.s32 %s105, 1
      %s107 = scalar_select %p104, %s105, %s106
      %p110 = pneg %p104
      %p111 = scmp.eq.s32.totalorder %s27, 1
      %p112 = por %p110, %p111
      %p113 = scmp.ne.s32.totalorder %s105, %s108
      %p114 = scmp.eq.s32.totalorder %s27, 0
      %p115 = por %p113, %p114
      %p116 = scmp.ne.s32.totalorder %s105, %s108
      %p117 = scmp.eq.s32.totalorder %s32, 1
      %p118 = por %p116, %p117
      %p119 = scmp.ne.s32.totalorder %s108, %s109
      %p120 = scmp.eq.s32.totalorder %s32, 0
      %p121 = por %p119, %p120
      %p122 = scmp.ne.s32.totalorder %s108, %s109
      %p123 = scmp.eq.s32.totalorder %s33, 1
      %p124 = por %p122, %p123
      %p126 = scmp.ne.s32.totalorder %s109, %s125
      %p127 = scmp.eq.s32.totalorder %s33, 0
      %p128 = por %p126, %p127
      %s129 = ssub.s32 %s34, %s46
      %p130 = scmp.eq.s32.totalorder %s129, 0
      %s132 = sadd.s32 %s131, 1
      %s133 = scalar_select %p130, %s131, %s132
      %p136 = pneg %p130
      %p137 = scmp.eq.s32.totalorder %s27, 1
      %p138 = por %p136, %p137
      %p139 = scmp.ne.s32.totalorder %s131, %s134
      %p140 = scmp.eq.s32.totalorder %s27, 0
      %p141 = por %p139, %p140
      %p142 = scmp.ne.s32.totalorder %s131, %s134
      %p143 = scmp.eq.s32.totalorder %s32, 1
      %p144 = por %p142, %p143
      %p145 = scmp.ne.s32.totalorder %s134, %s135
      %p146 = scmp.eq.s32.totalorder %s32, 0
      %p147 = por %p145, %p146
      %p148 = scmp.ne.s32.totalorder %s134, %s135
      %p149 = scmp.eq.s32.totalorder %s33, 1
      %p150 = por %p148, %p149
      %p152 = scmp.ne.s32.totalorder %s135, %s151
      %p153 = scmp.eq.s32.totalorder %s33, 0
      %p154 = por %p152, %p153
      %s155 = ssub.s32 %s34, %s46
      %p156 = scmp.eq.s32.totalorder %s155, 0
      %s158 = sadd.s32 %s157, 1
      %s159 = scalar_select %p156, %s157, %s158
      %p162 = pneg %p156
      %p163 = scmp.eq.s32.totalorder %s27, 1
      %p164 = por %p162, %p163
      %p165 = scmp.ne.s32.totalorder %s157, %s160
      %p166 = scmp.eq.s32.totalorder %s27, 0
      %p167 = por %p165, %p166
      %p168 = scmp.ne.s32.totalorder %s157, %s160
      %p169 = scmp.eq.s32.totalorder %s32, 1
      %p170 = por %p168, %p169
      %p171 = scmp.ne.s32.totalorder %s160, %s161
      %p172 = scmp.eq.s32.totalorder %s32, 0
      %p173 = por %p171, %p172
      %p174 = scmp.ne.s32.totalorder %s160, %s161
      %p175 = scmp.eq.s32.totalorder %s33, 1
      %p176 = por %p174, %p175
      %p178 = scmp.ne.s32.totalorder %s161, %s177
      %p179 = scmp.eq.s32.totalorder %s33, 0
      %p180 = por %p178, %p179
      %s182 = sadd.s32 %s181, 1
      %p185 = scmp.eq.s32.totalorder %s27, 1
      %p186 = scmp.ne.s32.totalorder %s181, %s183
      %p187 = scmp.eq.s32.totalorder %s27, 0
      %p188 = por %p186, %p187
      %p189 = scmp.ne.s32.totalorder %s181, %s183
      %p190 = scmp.eq.s32.totalorder %s32, 1
      %p191 = por %p189, %p190
      %p192 = scmp.ne.s32.totalorder %s183, %s184
      %p193 = scmp.eq.s32.totalorder %s32, 0
      %p194 = por %p192, %p193
      %p195 = scmp.ne.s32.totalorder %s183, %s184
      %p196 = scmp.eq.s32.totalorder %s33, 1
      %p197 = por %p195, %p196
      %p199 = scmp.ne.s32.totalorder %s184, %s198
      %p200 = scmp.eq.s32.totalorder %s33, 0
      %p201 = por %p199, %p200
      %s203 = sadd.s32 %s202, 1
      %p206 = scmp.eq.s32.totalorder %s27, 1
      %p207 = scmp.ne.s32.totalorder %s202, %s204
      %p208 = scmp.eq.s32.totalorder %s27, 0
      %p209 = por %p207, %p208
      %p210 = scmp.ne.s32.totalorder %s202, %s204
      %p211 = scmp.eq.s32.totalorder %s32, 1
      %p212 = por %p210, %p211
      %p213 = scmp.ne.s32.totalorder %s204, %s205
      %p214 = scmp.eq.s32.totalorder %s32, 0
      %p215 = por %p213, %p214
      %p216 = scmp.ne.s32.totalorder %s204, %s205
      %p217 = scmp.eq.s32.totalorder %s33, 1
      %p218 = por %p216, %p217
      %p220 = scmp.ne.s32.totalorder %s205, %s219
      %p221 = scmp.eq.s32.totalorder %s33, 0
      %p222 = por %p220, %p221
      %s224 = sadd.s32 %s223, 1
      %p227 = scmp.eq.s32.totalorder %s27, 1
      %p228 = scmp.ne.s32.totalorder %s223, %s225
      %p229 = scmp.eq.s32.totalorder %s27, 0
      %p230 = por %p228, %p229
      %p231 = scmp.ne.s32.totalorder %s223, %s225
      %p232 = scmp.eq.s32.totalorder %s32, 1
      %p233 = por %p231, %p232
      %p234 = scmp.ne.s32.totalorder %s225, %s226
      %p235 = scmp.eq.s32.totalorder %s32, 0
      %p236 = por %p234, %p235
      %p237 = scmp.ne.s32.totalorder %s225, %s226
      %p238 = scmp.eq.s32.totalorder %s33, 1
      %p239 = por %p237, %p238
      %p241 = scmp.ne.s32.totalorder %s226, %s240
      %p242 = scmp.eq.s32.totalorder %s33, 0
      %p243 = por %p241, %p242
      %s244 = ssub.s32 %s34, %s46
      %s245 = ssub.s32 %s35, %s42
      %s246 = sor.u32 %s244, %s245
      %p247 = scmp.eq.s32.totalorder %s246, 0
      %s249 = sadd.s32 %s248, 1
      %s250 = scalar_select %p247, %s248, %s249
      %p253 = pneg %p247
      %p254 = scmp.eq.s32.totalorder %s27, 1
      %p255 = por %p253, %p254
      %p256 = scmp.ne.s32.totalorder %s248, %s251
      %p257 = scmp.eq.s32.totalorder %s27, 0
      %p258 = por %p256, %p257
      %p259 = scmp.ne.s32.totalorder %s248, %s251
      %p260 = scmp.eq.s32.totalorder %s32, 1
      %p261 = por %p259, %p260
      %p262 = scmp.ne.s32.totalorder %s251, %s252
      %p263 = scmp.eq.s32.totalorder %s32, 0
      %p264 = por %p262, %p263
      %p265 = scmp.ne.s32.totalorder %s251, %s252
      %p266 = scmp.eq.s32.totalorder %s33, 1
      %p267 = por %p265, %p266
      %p269 = scmp.ne.s32.totalorder %s252, %s268
      %p270 = scmp.eq.s32.totalorder %s33, 0
      %p271 = por %p269, %p270
      %s272 = ssub.s32 %s34, %s46
      %s273 = ssub.s32 %s35, %s42
      %s274 = sor.u32 %s272, %s273
      %p275 = scmp.eq.s32.totalorder %s274, 0
      %s277 = sadd.s32 %s276, 1
      %s278 = scalar_select %p275, %s276, %s277
      %p281 = pneg %p275
      %p282 = scmp.eq.s32.totalorder %s27, 1
      %p283 = por %p281, %p282
      %p284 = scmp.ne.s32.totalorder %s276, %s279
      %p285 = scmp.eq.s32.totalorder %s27, 0
      %p286 = por %p284, %p285
      %p287 = scmp.ne.s32.totalorder %s276, %s279
      %p288 = scmp.eq.s32.totalorder %s32, 1
      %p289 = por %p287, %p288
      %p290 = scmp.ne.s32.totalorder %s279, %s280
      %p291 = scmp.eq.s32.totalorder %s32, 0
      %p292 = por %p290, %p291
      %p293 = scmp.ne.s32.totalorder %s279, %s280
      %p294 = scmp.eq.s32.totalorder %s33, 1
      %p295 = por %p293, %p294
      %p297 = scmp.ne.s32.totalorder %s280, %s296
      %p298 = scmp.eq.s32.totalorder %s33, 0
      %p299 = por %p297, %p298
      %s300 = ssub.s32 %s34, %s46
      %s301 = ssub.s32 %s35, %s42
      %s302 = sor.u32 %s300, %s301
      %p303 = scmp.eq.s32.totalorder %s302, 0
      %s305 = sadd.s32 %s304, 1
      %s306 = scalar_select %p303, %s304, %s305
      %p309 = pneg %p303
      %p310 = scmp.eq.s32.totalorder %s27, 1
      %p311 = por %p309, %p310
      %p312 = scmp.ne.s32.totalorder %s304, %s307
      %p313 = scmp.eq.s32.totalorder %s27, 0
      %p314 = por %p312, %p313
      %p315 = scmp.ne.s32.totalorder %s304, %s307
      %p316 = scmp.eq.s32.totalorder %s32, 1
      %p317 = por %p315, %p316
      %p318 = scmp.ne.s32.totalorder %s307, %s308
      %p319 = scmp.eq.s32.totalorder %s32, 0
      %p320 = por %p318, %p319
      %p321 = scmp.ne.s32.totalorder %s307, %s308
      %p322 = scmp.eq.s32.totalorder %s33, 1
      %p323 = por %p321, %p322
      %p325 = scmp.ne.s32.totalorder %s308, %s324
      %p326 = scmp.eq.s32.totalorder %s33, 0
      %p327 = por %p325, %p326
      %p328 = scmp.le.s32.totalorder 1, %s27
      %p329 = scmp.lt.s32.totalorder %s27, 3
      %p330 = pnand %p328, %p329
      %p331 = pneg %p330
      // Predicated region
      $region9: #{tpu_custom_call.1} parent=5 // pred_check
        _
      $region10: #{tpu_custom_call.1} parent=5 // pred_check_branch
        %333 = sbr.rel (%p330) target = $region12
      $region11: #{tpu_custom_call.1} parent=5 // pred_region
        %s334 = ssub.s32 %s27, 1
        // Predicated region
        $region13: #{tpu_custom_call.1} parent=11 // pred_check
          %p335 = pneg %p194
        $region14: #{tpu_custom_call.1} parent=11 // pred_check_branch
          %337 = sbr.rel (%p335) target = $region16
        $region15: #{tpu_custom_call.1} parent=11 // pred_region
          _
        $region16: #{tpu_custom_call.1} parent=11 // pred_fallthru
          _
        // Predicated region
        $region17: #{tpu_custom_call.1} parent=11 // pred_check
          %p338 = pneg %p215
        $region18: #{tpu_custom_call.1} parent=11 // pred_check_branch
          %340 = sbr.rel (%p338) target = $region20
        $region19: #{tpu_custom_call.1} parent=11 // pred_region
          %s342 = ssub.s32 256, 256
          %343 = vsyncadd [#allocation6], %s342
          %s344 = sshll.u32 [#allocation5], 4
          %s345 = int_to_ptr.vmem [resolvable:$true] %s344
          %350 = dma.hbm_to_vmem [thread:$0]  %s6, 256, %s345, [#allocation6], 64, 64, 4
        $region20: #{tpu_custom_call.1} parent=11 // pred_fallthru
          _
        // Predicated region
        $region21: #{tpu_custom_call.1} parent=11 // pred_check
          %p351 = pneg %p236
        $region22: #{tpu_custom_call.1} parent=11 // pred_check_branch
          %353 = sbr.rel (%p351) target = $region24
        $region23: #{tpu_custom_call.1} parent=11 // pred_region
          _
        $region24: #{tpu_custom_call.1} parent=11 // pred_fallthru
          _
      $region12: #{tpu_custom_call.1} parent=5 // pred_fallthru
        _
      %p354 = scmp.lt.s32.totalorder %s27, 2
      // Predicated region
      $region25: #{tpu_custom_call.1} parent=5 // pred_check
        %p355 = pneg %p354
      $region26: #{tpu_custom_call.1} parent=5 // pred_check_branch
        %357 = sbr.rel (%p355) target = $region28
      $region27: #{tpu_custom_call.1} parent=5 // pred_region
        // Predicated region
        $region29: #{tpu_custom_call.1} parent=27 // pred_check
          %p358 = pneg %p61
        $region30: #{tpu_custom_call.1} parent=27 // pred_check_branch
          %360 = sbr.rel (%p358) target = $region32
        $region31: #{tpu_custom_call.1} parent=27 // pred_region
          %s361 = smul.u32 2, %s35
          %p362 = scmp.lt.s32.totalorder %s34, 1
          %s363 = scalar_select %p362, %s34, 1
          %p364 = scmp.lt.s32.totalorder %s361, 1
          %s365 = scalar_select %p364, %s361, 1
          %s366 = smul.addr %s363, 2
          %s367 = sadd.s32 %s365, %s366
          %s368 = smul.addr %s367, 4
          %s369 = scalar_lea.vmem %s0, %s368
          %s370 = smul.u32 2, %s35
        $region32: #{tpu_custom_call.1} parent=27 // pred_fallthru
          _
        // Predicated region
        $region33: #{tpu_custom_call.1} parent=27 // pred_check
          %p371 = pneg %p87
        $region34: #{tpu_custom_call.1} parent=27 // pred_check_branch
          %373 = sbr.rel (%p371) target = $region36
        $region35: #{tpu_custom_call.1} parent=27 // pred_region
          %p374 = scmp.lt.s32.totalorder %s34, 1
          %s375 = scalar_select %p374, %s34, 1
          %s376 = smul.addr %s375, 2
          %s377 = smul.addr %s376, 4
          %s378 = scalar_lea.vmem %s1, %s377
        $region36: #{tpu_custom_call.1} parent=27 // pred_fallthru
          _
        // Predicated region
        $region37: #{tpu_custom_call.1} parent=27 // pred_check
          %p379 = pneg %p115
        $region38: #{tpu_custom_call.1} parent=27 // pred_check_branch
          %381 = sbr.rel (%p379) target = $region40
        $region39: #{tpu_custom_call.1} parent=27 // pred_region
          %s382 = smul.u32 2, %s35
          %p383 = scmp.lt.s32.totalorder %s34, 1
          %s384 = scalar_select %p383, %s34, 1
          %p385 = scmp.lt.s32.totalorder %s382, 1
          %s386 = scalar_select %p385, %s382, 1
          %s387 = smul.addr %s384, 2
          %s388 = sadd.s32 %s386, %s387
          %s389 = smul.addr %s388, 8
          %s390 = scalar_lea.vmem %s2, %s389
          %s391 = smul.u32 2, %s35
        $region40: #{tpu_custom_call.1} parent=27 // pred_fallthru
          _
        // Predicated region
        $region41: #{tpu_custom_call.1} parent=27 // pred_check
          %p392 = pneg %p141
        $region42: #{tpu_custom_call.1} parent=27 // pred_check_branch
          %394 = sbr.rel (%p392) target = $region44
        $region43: #{tpu_custom_call.1} parent=27 // pred_region
          %p395 = scmp.lt.s32.totalorder %s34, 1
          %s396 = scalar_select %p395, %s34, 1
          %s397 = scalar_lea.vmem %s3, %s396
        $region44: #{tpu_custom_call.1} parent=27 // pred_fallthru
          _
        // Predicated region
        $region45: #{tpu_custom_call.1} parent=27 // pred_check
          %p398 = pneg %p167
        $region46: #{tpu_custom_call.1} parent=27 // pred_check_branch
          %400 = sbr.rel (%p398) target = $region48
        $region47: #{tpu_custom_call.1} parent=27 // pred_region
          %s401 = sand.u32 %s157, 1
          %s402 = scalar_lea.sflag [#allocation3], %s401
          %s403 = sand.u32 %s157, 1
          %s404 = scalar_lea.vmem [#allocation2], %s403
          %s406 = ssub.s32 16, 16
          %407 = vsyncadd %s402, %s406
          %s408 = smul.addr %s34, 16
          %s409 = scalar_lea.hbm %s4, %s408
          %s411 = sshll.u32 %s404, 4
          %s412 = int_to_ptr.vmem [resolvable:$true] %s411
          %414 = dma.hbm_to_vmem [thread:$0]  %s409, 16, %s412, %s402
        $region48: #{tpu_custom_call.1} parent=27 // pred_fallthru
          _
      $region28: #{tpu_custom_call.1} parent=5 // pred_fallthru
        _
      %p415 = scmp.le.s32.totalorder 1, %s27
      %p416 = scmp.lt.s32.totalorder %s27, 3
      %p417 = pnand %p415, %p416
      %p418 = pneg %p417
      // Predicated region
      $region49: #{tpu_custom_call.1} parent=5 // pred_check
        _
      $region50: #{tpu_custom_call.1} parent=5 // pred_check_branch
        %420 = sbr.rel (%p417) target = $region52
      $region51: #{tpu_custom_call.1} parent=5 // pred_region
        %s421 = ssub.s32 %s27, 1
        %s422 = sand.u32 %s160, 1
        %s423 = scalar_lea.sflag [#allocation3], %s422
        %s424 = sand.u32 %s160, 1
        %s425 = scalar_lea.vmem [#allocation2], %s424
        // Predicated region
        $region53: #{tpu_custom_call.1} parent=51 // pred_check
          %p426 = pneg %p173
        $region54: #{tpu_custom_call.1} parent=51 // pred_check_branch
          %428 = sbr.rel (%p426) target = $region56
        $region55: #{tpu_custom_call.1} parent=51 // pred_region
          %429 = dma.done %s423, 16
        $region56: #{tpu_custom_call.1} parent=51 // pred_fallthru
          _
        // Predicated region
        $region57: #{tpu_custom_call.1} parent=51 // pred_check
          %p430 = pneg %p215
        $region58: #{tpu_custom_call.1} parent=51 // pred_check_branch
          %432 = sbr.rel (%p430) target = $region60
        $region59: #{tpu_custom_call.1} parent=51 // pred_region
          %433 = dma.done [#allocation6], 256
        $region60: #{tpu_custom_call.1} parent=51 // pred_fallthru
          _
        %s434 = smul.u32 2, %s37
        %p435 = scmp.lt.s32.totalorder %s36, 1
        %s436 = scalar_select %p435, %s36, 1
        %p437 = scmp.lt.s32.totalorder %s434, 1
        %s438 = scalar_select %p437, %s434, 1
        %s439 = smul.addr %s436, 2
        %s440 = sadd.s32 %s438, %s439
        %s441 = smul.addr %s440, 4
        %s442 = scalar_lea.vmem %s0, %s441
        %p443 = pneg %p67
        %p444 = pneg %p64
        %p445 = scmp.lt.s32.totalorder %s36, 1
        %s446 = scalar_select %p445, %s36, 1
        %s447 = smul.addr %s446, 2
        %s448 = smul.addr %s447, 4
        %s449 = scalar_lea.vmem %s1, %s448
        %p450 = pneg %p93
        %p451 = pneg %p90
        %s452 = smul.u32 2, %s37
        %p453 = scmp.lt.s32.totalorder %s36, 1
        %s454 = scalar_select %p453, %s36, 1
        %p455 = scmp.lt.s32.totalorder %s452, 1
        %s456 = scalar_select %p455, %s452, 1
        %s457 = smul.addr %s454, 2
        %s458 = sadd.s32 %s456, %s457
        %s459 = smul.addr %s458, 8
        %s460 = scalar_lea.vmem %s2, %s459
        %p461 = pneg %p121
        %p462 = pneg %p118
        %p463 = scmp.lt.s32.totalorder %s36, 1
        %s464 = scalar_select %p463, %s36, 1
        %s465 = scalar_lea.vmem %s3, %s464
        %p466 = pneg %p147
        %p467 = pneg %p144
        %s468 = sand.u32 %s160, 1
        %s469 = scalar_lea.sflag [#allocation3], %s468
        %s470 = sand.u32 %s160, 1
        %s471 = scalar_lea.vmem [#allocation2], %s470
        %p472 = pneg %p173
        %p473 = pneg %p170
        %p474 = pneg %p194
        %p475 = pneg %p191
        %p476 = pneg %p215
        %p477 = pneg %p212
        %p478 = pneg %p236
        %p479 = pneg %p233
        %p480 = pneg %p264
        %p481 = pneg %p261
        %s482 = sand.u32 %s251, 1
        %s483 = scalar_lea.sflag [#allocation4], %s482
        %s484 = sand.u32 %s251, 1
        %s485 = smul.addr %s484, 16
        %s486 = scalar_lea.vmem [#allocation7], %s485
        %p487 = pneg %p292
        %p488 = pneg %p289
        %s489 = sand.u32 %s32, 1
        %s490 = scalar_lea.sflag [#allocation9], %s489
        %s491 = sand.u32 %s279, 1
        %s492 = smul.addr %s491, 16
        %s493 = scalar_lea.vmem [#allocation8], %s492
        %p494 = pneg %p320
        %p495 = pneg %p317
        %s496 = sand.u32 %s32, 1
        %s497 = scalar_lea.sflag [#allocation9], %s496
        %s498 = sand.u32 %s307, 1
        %s499 = smul.addr %s498, 16
        %s500 = scalar_lea.vmem [#allocation10], %s499
        %s501 = smul.u32 2, %s37
        %p502 = scmp.lt.s32.totalorder %s36, 1
        %s503 = scalar_select %p502, %s36, 1
        %p504 = scmp.lt.s32.totalorder %s501, 1
        %s505 = scalar_select %p504, %s501, 1
        %s506 = smul.addr %s503, 2
        %s507 = sadd.s32 %s505, %s506
        %s508 = smul.addr %s507, 4
        %s509 = scalar_lea.vmem %s0, %s508
        %s510 = smul.u32 2, %s37
        %p511 = scmp.lt.s32.totalorder %s36, 1
        %s512 = scalar_select %p511, %s36, 1
        %s513 = smul.addr %s512, 2
        %s514 = smul.addr %s513, 4
        %s515 = scalar_lea.vmem %s1, %s514
        %s516 = smul.u32 2, %s37
        %p517 = scmp.lt.s32.totalorder %s36, 1
        %s518 = scalar_select %p517, %s36, 1
        %p519 = scmp.lt.s32.totalorder %s516, 1
        %s520 = scalar_select %p519, %s516, 1
        %s521 = smul.addr %s518, 2
        %s522 = sadd.s32 %s520, %s521
        %s523 = smul.addr %s522, 8
        %s524 = scalar_lea.vmem %s2, %s523
        %s525 = smul.u32 2, %s37
        %p526 = scmp.lt.s32.totalorder %s36, 1
        %s527 = scalar_select %p526, %s36, 1
        %s528 = scalar_lea.vmem %s3, %s527
        %s529 = smul.u32 2, %s37
        %s530 = smul.u32 2, %s37
        %s531 = smul.u32 2, %s37
        %v533 = vld [vmem:[%s509] sm:$0xf]
        %v534 = vld [vmem:[%s509 + $0x4] sm:$0xf]
        %v535 = vld [vmem:[%s515] sm:$0xf]
        %v536 = vld [vmem:[%s515 + $0x4] sm:$0xf]
        %v537 = vld [vmem:[%s5] sm:$0xf]
        %v538 = vld [vmem:[%s5 + $0x4] sm:$0xf]
        %v539 = vld [vmem:[%s5 + $0x8] sm:$0xf]
        %v540 = vld [vmem:[%s5 + $0xc] sm:$0xf]
        %v543 = vunpack.c.l.b16 %v533
        %v544 = vunpack.c.l.b16 %v534
        %v545 = vpack.c.b16 %v544, %v543
        %v550 = vunpack.c.l.b16 %v537
        %v551 = vunpack.c.l.b16 %v538
        %v552 = vunpack.c.l.b16 %v539
        %v553 = vunpack.c.l.b16 %v540
        %v554 = vpack.c.b16 %v551, %v550
        %v555 = vpack.c.b16 %v553, %v552
        %vm558 = vcmask 261120
        %v560 = vsel %vm558, %v545, 0
        %562 = vmatprep.subr.bf16.mxu0 0
        %563 = vmatpush1.bf16.msra.mxu0 %v554
        %564 = vmatprep.subr.bf16.mxu0 0
        %565 = vmatpush1.bf16.msra.mxu0 %v555
        %566 = vmatprep.subr.bf16.mxu0 0
        %567 = vmatpush1.bf16.msra.mxu0 0
        %568 = vmatprep.subr.bf16.mxu0 0
        %569 = vmatpush1.bf16.msra.mxu0 0
        %570 = vmatprep.subr.bf16.mxu0 0
        %571 = vmatpush1.bf16.msra.mxu0 0
        %572 = vmatprep.subr.bf16.mxu0 0
        %573 = vmatpush1.bf16.msra.mxu0 0
        %574 = vmatprep.subr.bf16.mxu0 0
        %575 = vmatpush1.bf16.msra.mxu0 0
        %576 = vmatprep.subr.bf16.mxu0 0
        %577 = vmatpush1.bf16.msra.mxu0 0
        %578 = vmatprep.subr.bf16.mxu0 0
        %579 = vmatpush1.bf16.msra.mxu0 0
        %580 = vmatprep.subr.bf16.mxu0 0
        %581 = vmatpush1.bf16.msra.mxu0 0
        %582 = vmatprep.subr.bf16.mxu0 0
        %583 = vmatpush1.bf16.msra.mxu0 0
        %584 = vmatprep.subr.bf16.mxu0 0
        %585 = vmatpush1.bf16.msra.mxu0 0
        %586 = vmatprep.subr.bf16.mxu0 0
        %587 = vmatpush1.bf16.msra.mxu0 0
        %588 = vmatprep.subr.bf16.mxu0 0
        %589 = vmatpush1.bf16.msra.mxu0 0
        %590 = vmatprep.subr.bf16.mxu0 0
        %591 = vmatpush1.bf16.msra.mxu0 0
        %592 = vmatprep.subr.bf16.mxu0 0
        %593 = vmatpush1.bf16.msra.mxu0 0
        %594 = vmatprep.mubr.bf16.mxu0 0
        %595 = vmatmul.mubr.bf16.gmra.mrb[0].mxu0 %v560
        %v596 = vpop.f32.mrb[0].mxu0
        %v597 = vadd.f32 0.0, %v596
        %v598 = vpop.f32.mrb[0].mxu0
        %v599 = vpop.f32.mrb[0].mxu0
        %v600 = vadd.f32 0.0, %v599
        %v601 = vpop.f32.mrb[0].mxu0
        %602 = vdwg.mxu0
        %v603 = vpack.c.bf16 %v600, %v597
        %v604 = vld [vmem:[%s425] sm:$0x1]
        %v606 = vlaneseq
        %v607 = vshrl.u32 %v606, 7
        %v608 = vsub.s32 0, %v607
        %v609 = vrot.slane %v604, %v608
        %v613 = vunpack.c.l.b16 %v535
        %v614 = vunpack.c.l.b16 %v536
        %v615 = vpack.c.b16 %v614, %v613
        %v617 = vsel %vm558, %v603, 0
        %v620 = vsel %vm558, %v615, 0
        %622 = vmatprep.subr.bf16.mxu0 0
        %623 = vmatpush1.bf16.xpose.msra.mxu0 %v620
        %624 = vmatprep.subr.bf16.mxu0 0
        %625 = vmatpush1.bf16.xpose.msra.mxu0 0
        %626 = vmatprep.subr.bf16.mxu0 0
        %627 = vmatpush1.bf16.xpose.msra.mxu0 0
        %628 = vmatprep.subr.bf16.mxu0 0
        %629 = vmatpush1.bf16.xpose.msra.mxu0 0
        %630 = vmatprep.subr.bf16.mxu0 0
        %631 = vmatpush1.bf16.xpose.msra.mxu0 0
        %632 = vmatprep.subr.bf16.mxu0 0
        %633 = vmatpush1.bf16.xpose.msra.mxu0 0
        %634 = vmatprep.subr.bf16.mxu0 0
        %635 = vmatpush1.bf16.xpose.msra.mxu0 0
        %636 = vmatprep.subr.bf16.mxu0 0
        %637 = vmatpush1.bf16.xpose.msra.mxu0 0
        %638 = vmatprep.subr.bf16.mxu0 0
        %639 = vmatpush1.bf16.xpose.msra.mxu0 0
        %640 = vmatprep.subr.bf16.mxu0 0
        %641 = vmatpush1.bf16.xpose.msra.mxu0 0
        %642 = vmatprep.subr.bf16.mxu0 0
        %643 = vmatpush1.bf16.xpose.msra.mxu0 0
        %644 = vmatprep.subr.bf16.mxu0 0
        %645 = vmatpush1.bf16.xpose.msra.mxu0 0
        %646 = vmatprep.subr.bf16.mxu0 0
        %647 = vmatpush1.bf16.xpose.msra.mxu0 0
        %648 = vmatprep.subr.bf16.mxu0 0
        %649 = vmatpush1.bf16.xpose.msra.mxu0 0
        %650 = vmatprep.subr.bf16.mxu0 0
        %651 = vmatpush1.bf16.xpose.msra.mxu0 0
        %652 = vmatprep.subr.bf16.mxu0 0
        %653 = vmatpush1.bf16.xpose.msra.mxu0 0
        %654 = vmatprep.mubr.bf16.mxu0 0
        %655 = vmatmul.mubr.bf16.gmra.mrb[0].mxu0 %v617
        %v656 = vpop.f32.mrb[0].mxu0
        %v657 = vadd.f32 %v609, %v656
        %v658 = vpop.f32.mrb[0].mxu0
        %v659 = vpop.f32.mrb[0].mxu0
        %v660 = vadd.f32 %v609, %v659
        %v661 = vpop.f32.mrb[0].mxu0
        %662 = vdwg.mxu0
        %v663 = vld [vmem:[%s524] sm:$0xff]
        %v664 = vld [vmem:[%s524 + $0x8] sm:$0xff]
        %v665 = vlog2.pop %v663
        %v666 = vmul.f32 %v665, 0.6931472
        %v667 = vlog2.pop %v664
        %v668 = vmul.f32 %v667, 0.6931472
        %v669 = vld [vmem:[%s528] sm:$0x1]
        %671 = vset.pattern.permute.xlu0 0
        %672 = vperm.xlu0 %671, %v666
        %v673 = vpop.permute.xlu0 %672
        %676 = vset.pattern.permute.xlu0 0
        %677 = vperm.xlu0 %676, %v668
        %v678 = vpop.permute.xlu0 %677
        %vm680 = vcmp.eq.s32.totalorder %v669, 1
        %v681 = vsel %vm680, 1, 0
        %v682 = vlaneseq
        %v683 = vshrl.u32 %v682, 7
        %v684 = vsub.s32 0, %v683
        %v685 = vrot.slane %v681, %v684
        %vm686 = vcmp.eq.s32.totalorder %v685, 1
        %687 = vset.pattern.permute.xlu0 1
        %688 = vperm.xlu0 %687, %v666
        %v689 = vpop.permute.xlu0 %688
        %691 = vset.pattern.permute.xlu0 1
        %692 = vperm.xlu0 %691, %v668
        %v693 = vpop.permute.xlu0 %692
        %v695 = vsel %vm686, %v689, %v673
        %v696 = vsel %vm686, %v693, %v678
        %vm697 = vcmp.eq.s32.totalorder %v669, 2
        %v698 = vsel %vm697, 1, 0
        %v699 = vlaneseq
        %v700 = vshrl.u32 %v699, 7
        %v701 = vsub.s32 0, %v700
        %v702 = vrot.slane %v698, %v701
        %vm703 = vcmp.eq.s32.totalorder %v702, 1
        %704 = vset.pattern.permute.xlu0 2
        %705 = vperm.xlu0 %704, %v666
        %v706 = vpop.permute.xlu0 %705
        %708 = vset.pattern.permute.xlu0 2
        %709 = vperm.xlu0 %708, %v668
        %v710 = vpop.permute.xlu0 %709
        %v712 = vsel %vm703, %v706, %v695
        %v713 = vsel %vm703, %v710, %v696
        %vm714 = vcmp.eq.s32.totalorder %v669, 3
        %v715 = vsel %vm714, 1, 0
        %v716 = vlaneseq
        %v717 = vshrl.u32 %v716, 7
        %v718 = vsub.s32 0, %v717
        %v719 = vrot.slane %v715, %v718
        %vm720 = vcmp.eq.s32.totalorder %v719, 1
        %721 = vset.pattern.permute.xlu0 3
        %722 = vperm.xlu0 %721, %v666
        %v723 = vpop.permute.xlu0 %722
        %725 = vset.pattern.permute.xlu0 3
        %726 = vperm.xlu0 %725, %v668
        %v727 = vpop.permute.xlu0 %726
        %v729 = vsel %vm720, %v723, %v712
        %v730 = vsel %vm720, %v727, %v713
        %v731 = vadd.f32 %v657, %v729
        %v732 = vadd.f32 %v660, %v730
        %vm733 = vcmask 130048
        %v734 = vsel %vm733, %v731, -inf
        %735 = vmax.xlane.f32.xlu0 %v734
        %v736 = vpop.xlane.xlu0 %735
        %v737 = vsel %vm733, %v732, -inf
        %738 = vmax.xlane.f32.xlu0 %v737
        %v739 = vpop.xlane.xlu0 %738
        %v740 = vsub.f32 %v731, %v736
        %v741 = vsub.f32 %v732, %v739
        %v742 = vmul.f32 %v740, 1.442695
        %v743 = vpow.pop %v742
        %v744 = vmul.f32 %v741, 1.442695
        %v745 = vpow.pop %v744
        %v746 = vsel %vm733, %v743, 0.0
        %747 = vadd.xlane.f32.xlu0 %v746
        %v748 = vpop.xlane.xlu0 %747
        %v749 = vsel %vm733, %v745, 0.0
        %750 = vadd.xlane.f32.xlu0 %v749
        %v751 = vpop.xlane.xlu0 %750
        %v752 = vrcp.pop %v748
        %v753 = vrcp.pop %v751
        %v754 = vmul.f32 %v743, %v752
        %v755 = vmul.f32 %v745, %v753
        %v756 = vpack.c.bf16 %v755, %v754
        %v759 = vsel %vm733, %v756, 0
        %761 = vmatprep.subr.bf16.mxu0 0
        %762 = vmatpush1.bf16.msra.mxu0 %v615
        %763 = vmatprep.subr.bf16.mxu0 0
        %764 = vmatpush1.bf16.msra.mxu0 0
        %765 = vmatprep.subr.bf16.mxu0 0
        %766 = vmatpush1.bf16.msra.mxu0 0
        %767 = vmatprep.subr.bf16.mxu0 0
        %768 = vmatpush1.bf16.msra.mxu0 0
        %769 = vmatprep.subr.bf16.mxu0 0
        %770 = vmatpush1.bf16.msra.mxu0 0
        %771 = vmatprep.subr.bf16.mxu0 0
        %772 = vmatpush1.bf16.msra.mxu0 0
        %773 = vmatprep.subr.bf16.mxu0 0
        %774 = vmatpush1.bf16.msra.mxu0 0
        %775 = vmatprep.subr.bf16.mxu0 0
        %776 = vmatpush1.bf16.msra.mxu0 0
        %777 = vmatprep.subr.bf16.mxu0 0
        %778 = vmatpush1.bf16.msra.mxu0 0
        %779 = vmatprep.subr.bf16.mxu0 0
        %780 = vmatpush1.bf16.msra.mxu0 0
        %781 = vmatprep.subr.bf16.mxu0 0
        %782 = vmatpush1.bf16.msra.mxu0 0
        %783 = vmatprep.subr.bf16.mxu0 0
        %784 = vmatpush1.bf16.msra.mxu0 0
        %785 = vmatprep.subr.bf16.mxu0 0
        %786 = vmatpush1.bf16.msra.mxu0 0
        %787 = vmatprep.subr.bf16.mxu0 0
        %788 = vmatpush1.bf16.msra.mxu0 0
        %789 = vmatprep.subr.bf16.mxu0 0
        %790 = vmatpush1.bf16.msra.mxu0 0
        %791 = vmatprep.subr.bf16.mxu0 0
        %792 = vmatpush1.bf16.msra.mxu0 0
        %793 = vmatprep.mubr.bf16.mxu0 0
        %794 = vmatmul.mubr.bf16.gmra.mrb[0].mxu0 %v759
        %v795 = vpop.f32.mrb[0].mxu0
        %v796 = vadd.f32 0.0, %v795
        %v797 = vpop.f32.mrb[0].mxu0
        %v798 = vpop.f32.mrb[0].mxu0
        %v799 = vadd.f32 0.0, %v798
        %v800 = vpop.f32.mrb[0].mxu0
        %801 = vdwg.mxu0
        %v802 = vpack.c.bf16 %v799, %v796
        %v803 = vld [vmem:[#allocation5] sm:$0xf]
        %v804 = vld [vmem:[#allocation5 + $0x4] sm:$0xf]
        %v805 = vld [vmem:[#allocation5 + $0x8] sm:$0xf]
        %v806 = vld [vmem:[#allocation5 + $0xc] sm:$0xf]
        %v807 = vld [vmem:[%s7] sm:$0xf]
        %v808 = vld [vmem:[%s7 + $0x4] sm:$0xf]
        %v809 = vld [vmem:[%s7 + $0x8] sm:$0xf]
        %v810 = vld [vmem:[%s7 + $0xc] sm:$0xf]
        %v815 = vunpack.c.l.b16 %v807
        %v816 = vunpack.c.l.b16 %v808
        %v817 = vunpack.c.l.b16 %v809
        %v818 = vunpack.c.l.b16 %v810
        %v819 = vpack.c.b16 %v816, %v815
        %v820 = vpack.c.b16 %v818, %v817
        %823 = vmatprep.subr.bf16.mxu0 0
        %824 = vmatpush1.bf16.msra.mxu0 %v819
        %825 = vmatprep.subr.bf16.mxu0 0
        %826 = vmatpush1.bf16.msra.mxu0 %v820
        %827 = vmatprep.subr.bf16.mxu0 0
        %828 = vmatpush1.bf16.msra.mxu0 0
        %829 = vmatprep.subr.bf16.mxu0 0
        %830 = vmatpush1.bf16.msra.mxu0 0
        %831 = vmatprep.subr.bf16.mxu0 0
        %832 = vmatpush1.bf16.msra.mxu0 0
        %833 = vmatprep.subr.bf16.mxu0 0
        %834 = vmatpush1.bf16.msra.mxu0 0
        %835 = vmatprep.subr.bf16.mxu0 0
        %836 = vmatpush1.bf16.msra.mxu0 0
        %837 = vmatprep.subr.bf16.mxu0 0
        %838 = vmatpush1.bf16.msra.mxu0 0
        %839 = vmatprep.subr.bf16.mxu0 0
        %840 = vmatpush1.bf16.msra.mxu0 0
        %841 = vmatprep.subr.bf16.mxu0 0
        %842 = vmatpush1.bf16.msra.mxu0 0
        %843 = vmatprep.subr.bf16.mxu0 0
        %844 = vmatpush1.bf16.msra.mxu0 0
        %845 = vmatprep.subr.bf16.mxu0 0
        %846 = vmatpush1.bf16.msra.mxu0 0
        %847 = vmatprep.subr.bf16.mxu0 0
        %848 = vmatpush1.bf16.msra.mxu0 0
        %849 = vmatprep.subr.bf16.mxu0 0
        %850 = vmatpush1.bf16.msra.mxu0 0
        %851 = vmatprep.subr.bf16.mxu0 0
        %852 = vmatpush1.bf16.msra.mxu0 0
        %853 = vmatprep.subr.bf16.mxu0 0
        %854 = vmatpush1.bf16.msra.mxu0 0
        %855 = vmatprep.mubr.bf16.mxu0 0
        %856 = vmatmul.mubr.bf16.gmra.mrb[0].mxu0 %v560
        %v857 = vpop.f32.mrb[0].mxu0
        %v858 = vadd.f32 0.0, %v857
        %v859 = vpop.f32.mrb[0].mxu0
        %v860 = vpop.f32.mrb[0].mxu0
        %v861 = vadd.f32 0.0, %v860
        %v862 = vpop.f32.mrb[0].mxu0
        %863 = vdwg.mxu0
        %v868 = vunpack.c.l.b16 %v803
        %v869 = vunpack.c.l.b16 %v804
        %v870 = vunpack.c.l.b16 %v805
        %v871 = vunpack.c.l.b16 %v806
        %v872 = vpack.c.b16 %v869, %v868
        %v873 = vpack.c.b16 %v871, %v870
        %v877 = vsel %vm558, %v802, 0
        %879 = vmatprep.subr.bf16.mxu0 0
        %880 = vmatpush1.bf16.msra.mxu0 %v872
        %881 = vmatprep.subr.bf16.mxu0 0
        %882 = vmatpush1.bf16.msra.mxu0 %v873
        %883 = vmatprep.subr.bf16.mxu0 0
        %884 = vmatpush1.bf16.msra.mxu0 0
        %885 = vmatprep.subr.bf16.mxu0 0
        %886 = vmatpush1.bf16.msra.mxu0 0
        %887 = vmatprep.subr.bf16.mxu0 0
        %888 = vmatpush1.bf16.msra.mxu0 0
        %889 = vmatprep.subr.bf16.mxu0 0
        %890 = vmatpush1.bf16.msra.mxu0 0
        %891 = vmatprep.subr.bf16.mxu0 0
        %892 = vmatpush1.bf16.msra.mxu0 0
        %893 = vmatprep.subr.bf16.mxu0 0
        %894 = vmatpush1.bf16.msra.mxu0 0
        %895 = vmatprep.subr.bf16.mxu0 0
        %896 = vmatpush1.bf16.msra.mxu0 0
        %897 = vmatprep.subr.bf16.mxu0 0
        %898 = vmatpush1.bf16.msra.mxu0 0
        %899 = vmatprep.subr.bf16.mxu0 0
        %900 = vmatpush1.bf16.msra.mxu0 0
        %901 = vmatprep.subr.bf16.mxu0 0
        %902 = vmatpush1.bf16.msra.mxu0 0
        %903 = vmatprep.subr.bf16.mxu0 0
        %904 = vmatpush1.bf16.msra.mxu0 0
        %905 = vmatprep.subr.bf16.mxu0 0
        %906 = vmatpush1.bf16.msra.mxu0 0
        %907 = vmatprep.subr.bf16.mxu0 0
        %908 = vmatpush1.bf16.msra.mxu0 0
        %909 = vmatprep.subr.bf16.mxu0 0
        %910 = vmatpush1.bf16.msra.mxu0 0
        %911 = vmatprep.mubr.bf16.mxu0 0
        %912 = vmatmul.mubr.bf16.gmra.mrb[0].mxu0 %v877
        %v913 = vpop.f32.mrb[0].mxu0
        %v914 = vadd.f32 %v858, %v913
        %v915 = vpop.f32.mrb[0].mxu0
        %v916 = vpop.f32.mrb[0].mxu0
        %v917 = vadd.f32 %v861, %v916
        %v918 = vpop.f32.mrb[0].mxu0
        %919 = vdwg.mxu0
        %v920 = vtanh.pop %v914
        %v921 = vtanh.pop %v917
        %922 = vst.msk [vmem:[%s486] sm:$0xff] %vm558, %v796
        %923 = vst.msk [vmem:[%s486 + $0x8] sm:$0xff] %vm558, %v799
        %924 = vst.msk [vmem:[%s493] sm:$0xff] %vm558, %v920
        %925 = vst.msk [vmem:[%s493 + $0x8] sm:$0xff] %vm558, %v921
        %926 = vst.msk [vmem:[%s500] sm:$0xff] %vm733, %v754
        %927 = vst.msk [vmem:[%s500 + $0x8] sm:$0xff] %vm733, %v755
        %s928 = sand.u32 %s251, 1
        %s929 = scalar_lea.sflag [#allocation4], %s928
        %s930 = sand.u32 %s251, 1
        %s931 = smul.addr %s930, 16
        %s932 = scalar_lea.vmem [#allocation7], %s931
        %s933 = sand.u32 %s32, 1
        %s934 = scalar_lea.sflag [#allocation9], %s933
        %s935 = sand.u32 %s279, 1
        %s936 = smul.addr %s935, 16
        %s937 = scalar_lea.vmem [#allocation8], %s936
        %s938 = sand.u32 %s32, 1
        %s939 = scalar_lea.sflag [#allocation9], %s938
        %s940 = sand.u32 %s307, 1
        %s941 = smul.addr %s940, 16
        %s942 = scalar_lea.vmem [#allocation10], %s941
        // Predicated region
        $region61: #{tpu_custom_call.1} parent=51 // pred_check
          %p943 = pneg %p261
        $region62: #{tpu_custom_call.1} parent=51 // pred_check_branch
          %945 = sbr.rel (%p943) target = $region64
        $region63: #{tpu_custom_call.1} parent=51 // pred_region
          %s946 = smul.u32 2, %s37
          %s948 = ssub.s32 256, 256
          %949 = vsyncadd %s929, %s948
          %s950 = smul.addr %s36, 2
          %s951 = sadd.s32 %s946, %s950
          %s952 = smul.addr %s951, 128
          %s953 = scalar_lea.hbm %s8, %s952
          %s954 = sshll.u32 %s932, 4
          %s955 = int_to_ptr.vmem [resolvable:$true] %s954
          %960 = dma.vmem_to_hbm [thread:$0]  %s955, 256, %s953, %s929, 128, 128, 8
        $region64: #{tpu_custom_call.1} parent=51 // pred_fallthru
          _
        // Predicated region
        $region65: #{tpu_custom_call.1} parent=51 // pred_check
          %p961 = pneg %p289
        $region66: #{tpu_custom_call.1} parent=51 // pred_check_branch
          %963 = sbr.rel (%p961) target = $region68
        $region67: #{tpu_custom_call.1} parent=51 // pred_region
          %s964 = smul.u32 2, %s37
          %s966 = ssub.s32 256, 256
          %967 = vsyncadd %s934, %s966
          %s968 = smul.addr %s36, 2
          %s969 = sadd.s32 %s964, %s968
          %s970 = smul.addr %s969, 128
          %s971 = scalar_lea.hbm %s9, %s970
          %s972 = sshll.u32 %s937, 4
          %s973 = int_to_ptr.vmem [resolvable:$true] %s972
          %978 = dma.vmem_to_hbm [thread:$0]  %s973, 256, %s971, %s934, 128, 128, 8
        $region68: #{tpu_custom_call.1} parent=51 // pred_fallthru
          _
        // Predicated region
        $region69: #{tpu_custom_call.1} parent=51 // pred_check
          %p979 = pneg %p317
        $region70: #{tpu_custom_call.1} parent=51 // pred_check_branch
          %981 = sbr.rel (%p979) target = $region72
        $region71: #{tpu_custom_call.1} parent=51 // pred_region
          %s982 = smul.u32 2, %s37
          %s984 = ssub.s32 256, 256
          %985 = vsyncadd %s939, %s984
          %s986 = smul.addr %s36, 2
          %s987 = sadd.s32 %s982, %s986
          %s988 = smul.addr %s987, 128
          %s989 = scalar_lea.hbm %s10, %s988
          %s990 = sshll.u32 %s942, 4
          %s991 = int_to_ptr.vmem [resolvable:$true] %s990
          %996 = dma.vmem_to_hbm [thread:$0]  %s991, 256, %s989, %s939, 128, 128, 8
        $region72: #{tpu_custom_call.1} parent=51 // pred_fallthru
          _
      $region52: #{tpu_custom_call.1} parent=5 // pred_fallthru
        _
      %p997 = scmp.le.s32.totalorder 2, %s27
      // Predicated region
      $region73: #{tpu_custom_call.1} parent=5 // pred_check
        %p998 = pneg %p997
      $region74: #{tpu_custom_call.1} parent=5 // pred_check_branch
        %1000 = sbr.rel (%p998) target = $region76
      $region75: #{tpu_custom_call.1} parent=5 // pred_region
        %s1001 = ssub.s32 %s27, 2
        // Predicated region
        $region77: #{tpu_custom_call.1} parent=75 // pred_check
          %p1002 = pneg %p267
        $region78: #{tpu_custom_call.1} parent=75 // pred_check_branch
          %1004 = sbr.rel (%p1002) target = $region80
        $region79: #{tpu_custom_call.1} parent=75 // pred_region
          %s1005 = sand.u32 %s252, 1
          %s1006 = scalar_lea.sflag [#allocation4], %s1005
          %s1007 = sand.u32 %s252, 1
          %s1008 = smul.addr %s1007, 16
          %s1009 = scalar_lea.vmem [#allocation7], %s1008
          %1010 = dma.done %s1006, 256
        $region80: #{tpu_custom_call.1} parent=75 // pred_fallthru
          _
        // Predicated region
        $region81: #{tpu_custom_call.1} parent=75 // pred_check
          %p1011 = pneg %p295
        $region82: #{tpu_custom_call.1} parent=75 // pred_check_branch
          %1013 = sbr.rel (%p1011) target = $region84
        $region83: #{tpu_custom_call.1} parent=75 // pred_region
          %s1014 = sand.u32 %s33, 1
          %s1015 = scalar_lea.sflag [#allocation9], %s1014
          %s1016 = sand.u32 %s280, 1
          %s1017 = smul.addr %s1016, 16
          %s1018 = scalar_lea.vmem [#allocation8], %s1017
          %1019 = dma.done %s1015, 256
        $region84: #{tpu_custom_call.1} parent=75 // pred_fallthru
          _
        // Predicated region
        $region85: #{tpu_custom_call.1} parent=75 // pred_check
          %p1020 = pneg %p323
        $region86: #{tpu_custom_call.1} parent=75 // pred_check_branch
          %1022 = sbr.rel (%p1020) target = $region88
        $region87: #{tpu_custom_call.1} parent=75 // pred_region
          %s1023 = sand.u32 %s33, 1
          %s1024 = scalar_lea.sflag [#allocation9], %s1023
          %s1025 = sand.u32 %s308, 1
          %s1026 = smul.addr %s1025, 16
          %s1027 = scalar_lea.vmem [#allocation10], %s1026
          %1028 = dma.done %s1024, 256
        $region88: #{tpu_custom_call.1} parent=75 // pred_fallthru
          _
      $region76: #{tpu_custom_call.1} parent=5 // pred_fallthru
        _
    $region6: #{tpu_custom_call.1} parent=1 // loop_footer
      %s31 = sadd.s32 1, %s27
    $region7: #{tpu_custom_call.1} parent=1 // loop_footer_branch
      %26 = sbr.rel target = $region3
    $region8: #{tpu_custom_call.1} parent=1 // loop_exit
      _
    %1029 = vsyncpa [#allocation3], 1
    %s1030 = scalar_lea.sflag [#allocation3], 1
    %1031 = vsyncpa %s1030, 1
    %1032 = vsyncpa [#allocation6], 1
    %1033 = vsyncpa [#allocation4], 1
    %s1034 = scalar_lea.sflag [#allocation4], 1
    %1035 = vsyncpa %s1034, 1
    %1036 = vsyncpa [#allocation9], 1
    %s1037 = scalar_lea.sflag [#allocation9], 1
    %1038 = vsyncpa %s1037, 1

</llo_original>
